<compile_context>
chip_gen: v5e
topology: v5e:2x2
jax: 0.10.0
libtpu: 0.0.40
codegen_flags: <defaults>
</compile_context>

<pallas_src>
import jax
import jax.numpy as jnp
from jax.experimental import pallas as pl
from jax.experimental.pallas import tpu as pltpu


# ----------------------------------------------------------------------------- kernels

def _energies_softmax(q, c, enc_ref, out_ref):
    """e[b,t] = <q[b (or 0)], enc[t,b]> + c[b]; writes softmax_t(e) zero-padded to lane width.

    q:   (B, H) or (1, H) float32
    c:   (B, 1) or (1, 1) float32
    enc: (T, B, H) native dtype, up-cast to f32 per element (f32 accumulation)
    out: (B, Tp) float32, Tp = round_up(T, 128); padded columns are exactly 0.
    """
    enc = enc_ref[...].astype(jnp.float32)            # (T, B, H) streamed in native dtype
    e_tb = jnp.sum(enc * q[None, :, :], axis=-1)      # (T, B)   VPU mul + lane reduce (XLU)

    t, b = e_tb.shape
    tp = out_ref.shape[-1]
    if tp > t:
        # Pad along the (tile-aligned for T % 8 == 0) sublane axis so the final store is
        # a single lane-dense vst; padded rows get a huge negative energy -> prob 0.
        e_tb = jnp.concatenate(
            [e_tb, jnp.full((tp - t, b), -1e30, jnp.float32)], axis=0)   # (Tp, B)

    e = jnp.transpose(e_tb) + c                       # (B, Tp) tiny XLU transpose + bias term

    m = jnp.max(e, axis=-1, keepdims=True)
    p = jnp.exp(e - m)                                # padded cols -> exp(-huge) == 0
    s = jnp.sum(p, axis=-1, keepdims=True)
    inv = pl.reciprocal(s, approx=True)               # EUP seed (keeps the divide off the VPU)
    inv = inv * (2.0 - s * inv)                       # two Newton steps -> f32-accurate
    inv = inv * (2.0 - s * inv)
    out_ref[...] = p * inv


def _attn_dot_kernel(hid_ref, enc_ref, out_ref):
    hid = hid_ref[...].astype(jnp.float32)                       # (B, H)
    c = jnp.zeros((hid.shape[0], 1), jnp.float32)
    _energies_softmax(hid, c, enc_ref, out_ref)


def _attn_general_kernel(hid_ref, enc_ref, w_ref, b_ref, out_ref):
    hid = hid_ref[...].astype(jnp.float32)                       # (B, H)
    w = w_ref[...].astype(jnp.float32)                           # (H_out, H_in) torch layout
    bias = b_ref[...].astype(jnp.float32)                        # (1, H_out)

    # Fold the projection into the small hidden side:
    #   e[b,t] = <hid[b], W enc[t,b] + bias> = <(hid W), enc[t,b]> + <hid, bias>
    if max(w.shape) <= 128:
        # Tiny H: keep the (B,H)x(H,H) contraction on the VPU/XLU — a <128-wide MXU call
        # would waste >90% of the systolic array.
        w_t = jnp.transpose(w)                                   # (H_in, H_out)
        q = jnp.sum(hid[:, None, :] * w_t[None, :, :], axis=-1)  # (B, H_in)
    else:
        q = jax.lax.dot_general(hid, w, (((1,), (0,)), ((), ())),
                                preferred_element_type=jnp.float32)

    c = jnp.sum(hid * bias, axis=-1, keepdims=True)              # (B, 1) = <hid, bias>
    _energies_softmax(q, c, enc_ref, out_ref)


def _attn_concat_kernel(hid_ref, enc_ref, uh_ref, ue_ref, vb_ref, out_ref):
    # Parameter-only folds (u_h = v^T W_h, u_e = v^T W_e, vb = <v, bias>) are done once in
    # the wrapper; per-step work (hidden- and enc-dependent) stays fused here.
    hid = hid_ref[...].astype(jnp.float32)                       # (B, H)
    u_h = uh_ref[...].astype(jnp.float32)                        # (1, H)
    u_e = ue_ref[...].astype(jnp.float32)                        # (1, H)
    vb = vb_ref[...].astype(jnp.float32)                         # (1, 1)
    c = jnp.sum(hid * u_h, axis=-1, keepdims=True) + vb          # (B, 1)
    _energies_softmax(u_e, c, enc_ref, out_ref)


# ----------------------------------------------------------------------------- wrapper

def attn_forward(hidden, encoder_outputs, method="general",
                 attn_weight=None, attn_bias=None, v=None):
    """hidden: (L, B, H) or (B, H); encoder_outputs: (T, B, H). Returns (B, 1, T) float32."""
    T, B, H = encoder_outputs.shape
    hid = hidden[-1] if hidden.ndim == 3 else hidden             # (B, H), last decoder layer

    # Lane-dense output width (single unmasked-lane store in the kernel).
    Tp = ((T + 127) // 128) * 128
    out_shape = jax.ShapeDtypeStruct((B, Tp), jnp.float32)
    vspec = pl.BlockSpec(memory_space=pltpu.MemorySpace.VMEM)

    # Single-shot kernel (whole problem resident in VMEM) — right choice up to the
    # MAX_LENGTH~50 scale of this model.  If enc grows large, raise the scoped VMEM
    # limit instead of shrinking blocks (per-grid-step overhead ~0.35us); for truly
    # large T/H you would instead grid over B / T-tiles and mark them "parallel" so
    # v7x's two TensorCores both get work.
    enc_bytes = encoder_outputs.size * encoder_outputs.dtype.itemsize
    cparams = None
    if enc_bytes > (8 << 20):
        cparams = pltpu.CompilerParams(
            vmem_limit_bytes=min(2 * enc_bytes + (4 << 20), 40 << 20))

    if method == "dot":
        # No projection at all (skip the W=I matmul entirely).
        out_p = pl.pallas_call(
            _attn_dot_kernel, out_shape=out_shape,
            in_specs=[vspec, vspec], out_specs=vspec,
            compiler_params=cparams,
        )(hid, encoder_outputs)

    elif method == "general":
        w = attn_weight                                          # (H, H), torch layout as-is
        b = attn_bias.reshape(1, H)
        out_p = pl.pallas_call(
            _attn_general_kernel, out_shape=out_shape,
            in_specs=[vspec] * 4, out_specs=vspec,
            compiler_params=cparams,
        )(hid, encoder_outputs, w, b)

    elif method == "concat":
        # v . (W [h; e] + b) = <v^T W_h, h> + <v^T W_e, e> + <v, b>   (parameter-only folds)
        w = attn_weight.astype(jnp.float32)                      # (H, 2H)
        b = attn_bias.reshape(1, H).astype(jnp.float32)
        vv = v.reshape(1, H).astype(jnp.float32)
        u_h = vv @ w[:, :H]                                      # (1, H)
        u_e = vv @ w[:, H:]                                      # (1, H)
        vb = jnp.sum(vv * b, axis=-1, keepdims=True)             # (1, 1)
        out_p = pl.pallas_call(
            _attn_concat_kernel, out_shape=out_shape,
            in_specs=[vspec] * 5, out_specs=vspec,
            compiler_params=cparams,
        )(hid, encoder_outputs, u_h, u_e, vb)

    else:
        raise NotImplementedError(f"unknown attention method: {method}")

    return out_p[:, None, :T]                                    # (B, 1, T)


# ----------------------------------------------------------------------------- references

def _softmax_bt(e):
    return jax.nn.softmax(e, axis=-1)[:, None, :]


def _ref_general(hidden, enc, w, b):
    hid = hidden[-1] if hidden.ndim == 3 else hidden
    proj = jnp.einsum("tbh,oh->tbo", enc.astype(jnp.float32), w) + b
    return _softmax_bt(jnp.einsum("tbo,bo->bt", proj, hid))


def _ref_dot(hidden, enc):
    hid = hidden[-1] if hidden.ndim == 3 else hidden
    return _softmax_bt(jnp.einsum("tbh,bh->bt", enc.astype(jnp.float32), hid))


def _ref_concat(hidden, enc, w, b, v):
    hid = hidden[-1] if hidden.ndim == 3 else hidden
    H = hid.shape[-1]
    proj = (jnp.einsum("tbh,oh->tbo", enc.astype(jnp.float32), w[:, H:])
            + jnp.einsum("bh,oh->bo", hid, w[:, :H])[None, :, :]
            + b[None, None, :])
    return _softmax_bt(jnp.einsum("tbo,o->bt", proj, v.reshape(-1)))


# ----------------------------------------------------------------------------- main

if __name__ == "__main__":
    B, T, H = 2, 8, 32

    key = jax.random.PRNGKey(0)
    ks = jax.random.split(key, 7)
    hidden = jax.random.normal(ks[0], (1, B, H), dtype=jnp.float32)       # (layers, B, H)
    enc = jax.random.normal(ks[1], (T, B, H), dtype=jnp.float32)          # (T, B, H)

    bound = 1.0 / (H ** 0.5)
    w_gen = jax.random.uniform(ks[2], (H, H), jnp.float32, -bound, bound)
    b_gen = jax.random.uniform(ks[3], (H,), jnp.float32, -bound, bound)
    bound2 = 1.0 / ((2 * H) ** 0.5)
    w_cat = jax.random.uniform(ks[4], (H, 2 * H), jnp.float32, -bound2, bound2)
    b_cat = jax.random.uniform(ks[5], (H,), jnp.float32, -bound2, bound2)
    v_cat = jax.random.normal(ks[6], (1, H), dtype=jnp.float32)

    fwd = jax.jit(attn_forward, static_argnames=("method",))

    # Tolerances: the kernel reassociates the energy accumulation (hid-side fold) vs.
    # the reference's enc-side projection, so allow ~1e-4 absolute drift on probabilities.
    ATOL = 1e-4

    # method='general'
    out_g = jax.block_until_ready(
        fwd(hidden, enc, method="general", attn_weight=w_gen, attn_bias=b_gen))
    ref_g = _ref_general(hidden, enc, w_gen, b_gen)
    assert out_g.shape == (B, 1, T), out_g.shape
    assert jnp.allclose(out_g, ref_g, atol=ATOL, rtol=ATOL)
    assert jnp.allclose(jnp.sum(out_g, axis=-1), 1.0, atol=1e-5)

    # method='dot'
    out_d = jax.block_until_ready(fwd(hidden, enc, method="dot"))
    ref_d = _ref_dot(hidden, enc)
    assert out_d.shape == (B, 1, T), out_d.shape
    assert jnp.allclose(out_d, ref_d, atol=ATOL, rtol=ATOL)
    assert jnp.allclose(jnp.sum(out_d, axis=-1), 1.0, atol=1e-5)

    # method='concat'  (the method BahdanauAttnDecoderRNN actually instantiates)
    out_c = jax.block_until_ready(
        fwd(hidden, enc, method="concat", attn_weight=w_cat, attn_bias=b_cat, v=v_cat))
    ref_c = _ref_concat(hidden, enc, w_cat, b_cat, v_cat)
    assert out_c.shape == (B, 1, T), out_c.shape
    assert jnp.allclose(out_c, ref_c, atol=ATOL, rtol=ATOL)
    assert jnp.allclose(jnp.sum(out_c, axis=-1), 1.0, atol=1e-5)

    # encoder states streamed in bf16 (halves HBM traffic), f32 accumulation in-kernel
    enc_bf16 = enc.astype(jnp.bfloat16)
    out_b = jax.block_until_ready(
        fwd(hidden, enc_bf16, method="general", attn_weight=w_gen, attn_bias=b_gen))
    ref_b = _ref_general(hidden, enc_bf16.astype(jnp.float32), w_gen, b_gen)
    assert jnp.allclose(out_b, ref_b, atol=ATOL, rtol=ATOL)

    print("KERNEL_OK")
</pallas_src>

<mosaic_0001>
module attributes {stable_mosaic.version = 11 : i64} {
  func.func @_attn_general_kernel(%arg0: memref<2x32xf32, #tpu.memory_space<vmem>>, %arg1: memref<8x2x32xf32, #tpu.memory_space<vmem>>, %arg2: memref<32x32xf32, #tpu.memory_space<vmem>>, %arg3: memref<1x32xf32, #tpu.memory_space<vmem>>, %arg4: memref<2x128xf32, #tpu.memory_space<vmem>>) attributes {dimension_semantics = [], scalar_prefetch = 0 : i64, scratch_operands = 0 : i64, tpu.core_type = #tpu.core_type<tc>} {
    %c0 = arith.constant 0 : index
    %c0_0 = arith.constant 0 : index
    %0 = vector.load %arg0[%c0, %c0_0] : memref<2x32xf32, #tpu.memory_space<vmem>>, vector<2x32xf32>
    %c0_1 = arith.constant 0 : index
    %c0_2 = arith.constant 0 : index
    %1 = vector.load %arg2[%c0_1, %c0_2] : memref<32x32xf32, #tpu.memory_space<vmem>>, vector<32x32xf32>
    %c0_3 = arith.constant 0 : index
    %c0_4 = arith.constant 0 : index
    %2 = vector.load %arg3[%c0_3, %c0_4] : memref<1x32xf32, #tpu.memory_space<vmem>>, vector<1x32xf32>
    %3 = tpu.transpose %1, [1, 0] : vector<32x32xf32> -> vector<32x32xf32>
    %4 = vector.shape_cast %0 : vector<2x32xf32> to vector<2x1x32xf32>
    %5 = vector.shape_cast %3 : vector<32x32xf32> to vector<1x32x32xf32>
    %6 = vector.broadcast %4 : vector<2x1x32xf32> to vector<2x32x32xf32>
    %7 = vector.broadcast %5 : vector<1x32x32xf32> to vector<2x32x32xf32>
    %8 = arith.mulf %6, %7 : vector<2x32x32xf32>
    %cst = arith.constant dense<0.000000e+00> : vector<2x32xf32>
    %9 = vector.multi_reduction <add>, %8, %cst [2] : vector<2x32x32xf32> to vector<2x32xf32>
    %10 = vector.broadcast %2 : vector<1x32xf32> to vector<2x32xf32>
    %11 = arith.mulf %0, %10 : vector<2x32xf32>
    %cst_5 = arith.constant dense<0.000000e+00> : vector<2xf32>
    %12 = vector.multi_reduction <add>, %11, %cst_5 [1] : vector<2x32xf32> to vector<2xf32>
    %13 = vector.shape_cast %12 : vector<2xf32> to vector<2x1xf32>
    %c0_6 = arith.constant 0 : index
    %c0_7 = arith.constant 0 : index
    %c0_8 = arith.constant 0 : index
    %14 = vector.load %arg1[%c0_6, %c0_7, %c0_8] : memref<8x2x32xf32, #tpu.memory_space<vmem>>, vector<8x2x32xf32>
    %15 = vector.shape_cast %9 : vector<2x32xf32> to vector<1x2x32xf32>
    %16 = vector.broadcast %15 : vector<1x2x32xf32> to vector<8x2x32xf32>
    %17 = arith.mulf %14, %16 : vector<8x2x32xf32>
    %cst_9 = arith.constant dense<0.000000e+00> : vector<8x2xf32>
    %18 = vector.multi_reduction <add>, %17, %cst_9 [2] : vector<8x2x32xf32> to vector<8x2xf32>
    %cst_10 = arith.constant -1.000000e+30 : f32
    %19 = vector.broadcast %cst_10 : f32 to vector<120x2xf32>
    %20 = tpu.concatenate %18, %19 in 0 : vector<8x2xf32>, vector<120x2xf32> -> vector<128x2xf32>
    %21 = tpu.transpose %20, [1, 0] : vector<128x2xf32> -> vector<2x128xf32>
    %22 = vector.broadcast %13 : vector<2x1xf32> to vector<2x128xf32>
    %23 = arith.addf %21, %22 : vector<2x128xf32>
    %cst_11 = arith.constant dense<0xFF800000> : vector<2xf32>
    %24 = vector.multi_reduction <maximumf>, %23, %cst_11 [1] : vector<2x128xf32> to vector<2xf32>
    %25 = vector.shape_cast %24 : vector<2xf32> to vector<2x1xf32>
    %26 = vector.broadcast %25 : vector<2x1xf32> to vector<2x128xf32>
    %27 = arith.subf %23, %26 : vector<2x128xf32>
    %28 = math.exp %27 : vector<2x128xf32>
    %cst_12 = arith.constant dense<0.000000e+00> : vector<2xf32>
    %29 = vector.multi_reduction <add>, %28, %cst_12 [1] : vector<2x128xf32> to vector<2xf32>
    %30 = vector.shape_cast %29 : vector<2xf32> to vector<2x1xf32>
    %31 = tpu.reciprocal %30 {approx = true} : vector<2x1xf32> -> vector<2x1xf32>
    %32 = arith.mulf %30, %31 : vector<2x1xf32>
    %cst_13 = arith.constant 2.000000e+00 : f32
    %33 = vector.broadcast %cst_13 : f32 to vector<2x1xf32>
    %34 = arith.subf %33, %32 : vector<2x1xf32>
    %35 = arith.mulf %31, %34 : vector<2x1xf32>
    %36 = arith.mulf %30, %35 : vector<2x1xf32>
    %cst_14 = arith.constant 2.000000e+00 : f32
    %37 = vector.broadcast %cst_14 : f32 to vector<2x1xf32>
    %38 = arith.subf %37, %36 : vector<2x1xf32>
    %39 = arith.mulf %35, %38 : vector<2x1xf32>
    %40 = vector.broadcast %39 : vector<2x1xf32> to vector<2x128xf32>
    %41 = arith.mulf %28, %40 : vector<2x128xf32>
    %c0_15 = arith.constant 0 : index
    %c0_16 = arith.constant 0 : index
    %42 = vector.load %arg4[%c0_15, %c0_16] : memref<2x128xf32, #tpu.memory_space<vmem>>, vector<2x128xf32>
    tpu.vector_store %arg4[%c0_15, %c0_16], %41 {strides = array<i32>} : memref<2x128xf32, #tpu.memory_space<vmem>>, vector<2x128xf32>,
    return
  }
}

</mosaic_0001>

<llo_original>
// kernel: attn_forward.1
$region0: #{attn_forward.1}
  #allocation0 [shape = 'u32[]', space=smem, size = 0x4, offset = 0x4, fixed_abs, tag = 'smem constant byte address 0x4 - core index']
  #allocation1 [shape = 'u32[72,128]{1,0:T(1,128)}', space=vmem, size = 0x9000, scoped, tag = 'internal scratch']
  %s0 = inlined_call_operand.hbm [shape: f32[2,32], index: 0, kind: input, shape index: {}]
  %s1 = inlined_call_operand.hbm [shape: f32[8,2,32], index: 1, kind: input, shape index: {}]
  %s2 = inlined_call_operand.hbm [shape: f32[32,32], index: 2, kind: input, shape index: {}]
  %s3 = inlined_call_operand.vmem [shape: f32[1,32], index: 3, kind: input, shape index: {}]
  %s4 = inlined_call_operand.hbm [shape: f32[2,128], index: 4, kind: output, shape index: {}]
  %s5 = sld [smem:[#allocation0]]
  $region38: #{attn_forward.1} parent=0
    _
  %s7 = ssub.s32 1, %s5
  %s8 = scalar_select 0, %s7, %s5
  $region1: #{attn_forward.1} parent=0
    #allocation2 [shape = 'u8[1024]{0}', space=vmem, size = 0x400, scoped, tag = 'input window, operand 0, single buffered']
    #allocation3 [shape = 's32[1]{0}', space=sflag, size = 0x4, scoped, tag = 'scoped memory for attn_forward.1']
    #allocation4 [shape = 's32[1]{0}', space=sflag, size = 0x4, scoped, tag = 'scoped memory for attn_forward.1']
    #allocation5 [shape = 'u8[8192]{0}', space=vmem, size = 0x2000, scoped, tag = 'input window, operand 1, single buffered']
    #allocation6 [shape = 's32[1]{0}', space=sflag, size = 0x4, scoped, tag = 'scoped memory for attn_forward.1']
    #allocation7 [shape = 'u8[16384]{0}', space=vmem, size = 0x4000, scoped, tag = 'input window, operand 2, single buffered']
    #allocation8 [shape = 'u8[1024]{0}', space=vmem, size = 0x400, scoped, tag = 'output window, operand 0, single buffered']
    %9 = vsyncpa [#allocation3], 0
    %10 = vsyncpa [#allocation6], 0
    %11 = vsyncpa [#allocation4], 0
    // Predicated region
    $region2: #{attn_forward.1} parent=1 // pred_check
      _
    $region3: #{attn_forward.1} parent=1 // pred_check_branch
      %13 = sbr.rel (0) target = $region5
    $region4: #{attn_forward.1} parent=1 // pred_region
      %15 = vsyncadd [#allocation3], 0
      %s17 = sshll.u32 %s0, 4
      %s18 = int_to_ptr.hbm [resolvable:$true] %s17
      %s19 = sshll.u32 [#allocation2], 4
      %s20 = int_to_ptr.vmem [resolvable:$true] %s19
      %22 = dma.hbm_to_vmem [thread:$0]  %s18, 32, %s20, [#allocation3]
    $region5: #{attn_forward.1} parent=1 // pred_fallthru
      _
    // Predicated region
    $region6: #{attn_forward.1} parent=1 // pred_check
      _
    $region7: #{attn_forward.1} parent=1 // pred_check_branch
      %24 = sbr.rel (0) target = $region9
    $region8: #{attn_forward.1} parent=1 // pred_region
      %26 = vsyncadd [#allocation6], 0
      %s27 = sshll.u32 %s1, 4
      %s28 = int_to_ptr.hbm [resolvable:$true] %s27
      %s29 = sshll.u32 [#allocation5], 4
      %s30 = int_to_ptr.vmem [resolvable:$true] %s29
      %35 = dma.hbm_to_vmem [thread:$0]  %s28, 256, %s30, [#allocation6], 32, 32, 2
    $region9: #{attn_forward.1} parent=1 // pred_fallthru
      _
    // Predicated region
    $region10: #{attn_forward.1} parent=1 // pred_check
      _
    $region11: #{attn_forward.1} parent=1 // pred_check_branch
      %37 = sbr.rel (0) target = $region13
    $region12: #{attn_forward.1} parent=1 // pred_region
      %39 = vsyncadd [#allocation6], 0
      %s40 = sshll.u32 %s2, 4
      %s41 = int_to_ptr.hbm [resolvable:$true] %s40
      %s42 = sshll.u32 [#allocation7], 4
      %s43 = int_to_ptr.vmem [resolvable:$true] %s42
      %48 = dma.hbm_to_vmem [thread:$0]  %s41, 512, %s43, [#allocation6], 128, 128, 8
    $region13: #{attn_forward.1} parent=1 // pred_fallthru
      _
    // Predicated region
    $region14: #{attn_forward.1} parent=1 // pred_check
      _
    $region15: #{attn_forward.1} parent=1 // pred_check_branch
      %50 = sbr.rel (0) target = $region17
    $region16: #{attn_forward.1} parent=1 // pred_region
      _
    $region17: #{attn_forward.1} parent=1 // pred_fallthru
      _
    // Predicated region
    $region18: #{attn_forward.1} parent=1 // pred_check
      _
    $region19: #{attn_forward.1} parent=1 // pred_check_branch
      %52 = sbr.rel (0) target = $region21
    $region20: #{attn_forward.1} parent=1 // pred_region
      %54 = dma.done [#allocation3], 32
    $region21: #{attn_forward.1} parent=1 // pred_fallthru
      _
    // Predicated region
    $region22: #{attn_forward.1} parent=1 // pred_check
      _
    $region23: #{attn_forward.1} parent=1 // pred_check_branch
      %56 = sbr.rel (0) target = $region25
    $region24: #{attn_forward.1} parent=1 // pred_region
      %58 = dma.done [#allocation6], 256
    $region25: #{attn_forward.1} parent=1 // pred_fallthru
      _
    // Predicated region
    $region26: #{attn_forward.1} parent=1 // pred_check
      _
    $region27: #{attn_forward.1} parent=1 // pred_check_branch
      %60 = sbr.rel (0) target = $region29
    $region28: #{attn_forward.1} parent=1 // pred_region
      %62 = dma.done [#allocation6], 512
    $region29: #{attn_forward.1} parent=1 // pred_fallthru
      _
    %v63 = vld [vmem:[#allocation2] sm:$0x3]
    %v64 = vld [vmem:[#allocation7] sm:$0xff]
    %v65 = vld [vmem:[#allocation7 + $0x8] sm:$0xff]
    %v66 = vld [vmem:[#allocation7 + $0x10] sm:$0xff]
    %v67 = vld [vmem:[#allocation7 + $0x18] sm:$0xff]
    %v68 = vld [vmem:[%s3] sm:$0x1]
    %69 = vxpose.xlu0.b32.start [1/16] %v64, 128
    %70 = vxpose.xlu0.b32.cont [2/16] %v65, 128
    %71 = vxpose.xlu0.b32.cont [3/16] %v66, 128
    %72 = vxpose.xlu0.b32.cont [4/16] %v67, 128
    %73 = vxpose.xlu0.b32.cont [5/16] 0.0, 128
    %74 = vxpose.xlu0.b32.cont [6/16] 0.0, 128
    %75 = vxpose.xlu0.b32.cont [7/16] 0.0, 128
    %76 = vxpose.xlu0.b32.cont [8/16] 0.0, 128
    %77 = vxpose.xlu0.b32.cont [9/16] 0.0, 128
    %78 = vxpose.xlu0.b32.cont [10/16] 0.0, 128
    %79 = vxpose.xlu0.b32.cont [11/16] 0.0, 128
    %80 = vxpose.xlu0.b32.cont [12/16] 0.0, 128
    %81 = vxpose.xlu0.b32.cont [13/16] 0.0, 128
    %82 = vxpose.xlu0.b32.cont [14/16] 0.0, 128
    %83 = vxpose.xlu0.b32.cont [15/16] 0.0, 128
    %84 = vxpose.xlu0.b32.end [16/16] 0.0, 128
    %v85 = vpop.trf.xlu0
    %v86 = vpop.trf.xlu0
    %v87 = vpop.trf.xlu0
    %v88 = vpop.trf.xlu0
    %v89 = vpop.trf.xlu0
    %v90 = vpop.trf.xlu0
    %v91 = vpop.trf.xlu0
    %v92 = vpop.trf.xlu0
    %v93 = vpop.trf.xlu0
    %v94 = vpop.trf.xlu0
    %v95 = vpop.trf.xlu0
    %v96 = vpop.trf.xlu0
    %v97 = vpop.trf.xlu0
    %v98 = vpop.trf.xlu0
    %v99 = vpop.trf.xlu0
    %v100 = vpop.trf.xlu0
    %v102 = vrot.slane %v63, 1
    %v103 = vperm.slane %v63, 0
    %v104 = vperm.slane %v102, 0
    %v107 = vmul.f32 %v103, %v85
    %v108 = vmul.f32 %v103, %v86
    %v109 = vmul.f32 %v103, %v87
    %v110 = vmul.f32 %v103, %v88
    %v111 = vmul.f32 %v104, %v85
    %v112 = vmul.f32 %v104, %v86
    %v113 = vmul.f32 %v104, %v87
    %v114 = vmul.f32 %v104, %v88
    %vm115 = vcmask 261120
    %v116 = vsel %vm115, %v107, 0.0
    %117 = vadd.xlane.f32.xlu0 %v116
    %v118 = vpop.xlane.xlu0 %117
    %v119 = vsel %vm115, %v108, 0.0
    %120 = vadd.xlane.f32.xlu0 %v119
    %v121 = vpop.xlane.xlu0 %120
    %v122 = vsel %vm115, %v109, 0.0
    %123 = vadd.xlane.f32.xlu0 %v122
    %v124 = vpop.xlane.xlu0 %123
    %v125 = vsel %vm115, %v110, 0.0
    %126 = vadd.xlane.f32.xlu0 %v125
    %v127 = vpop.xlane.xlu0 %126
    %v128 = vsel %vm115, %v111, 0.0
    %129 = vadd.xlane.f32.xlu0 %v128
    %v130 = vpop.xlane.xlu0 %129
    %v131 = vsel %vm115, %v112, 0.0
    %132 = vadd.xlane.f32.xlu0 %v131
    %v133 = vpop.xlane.xlu0 %132
    %v134 = vsel %vm115, %v113, 0.0
    %135 = vadd.xlane.f32.xlu0 %v134
    %v136 = vpop.xlane.xlu0 %135
    %v137 = vsel %vm115, %v114, 0.0
    %138 = vadd.xlane.f32.xlu0 %v137
    %v139 = vpop.xlane.xlu0 %138
    %v141 = vperm.slane %v68, 0
    %v143 = vmul.f32 %v63, %v141
    %vm144 = vcmask 254976
    %v145 = vsel %vm144, %v143, 0.0
    %146 = vadd.xlane.f32.xlu0 %v145
    %v147 = vpop.xlane.xlu0 %146
    %v148 = vld [vmem:[#allocation5] sm:$0x3]
    %v149 = vld [vmem:[#allocation5 + $0x2] sm:$0x3]
    %v150 = vld [vmem:[#allocation5 + $0x4] sm:$0x3]
    %v151 = vld [vmem:[#allocation5 + $0x6] sm:$0x3]
    %v152 = vld [vmem:[#allocation5 + $0x8] sm:$0x3]
    %v153 = vld [vmem:[#allocation5 + $0xa] sm:$0x3]
    %v154 = vld [vmem:[#allocation5 + $0xc] sm:$0x3]
    %v155 = vld [vmem:[#allocation5 + $0xe] sm:$0x3]
    %v164 = vlaneseq
    %v165 = vand.u32 %v164, 127
    %v166 = vperm.slane %v118, %v165
    %v167 = vadd.s32 %v165, 4294967288
    %v168 = vperm.slane %v121, %v167
    %vm169 = vcmask 130112
    %v170 = vsel %vm169, %v168, %v166
    %v171 = vadd.s32 %v165, 4294967280
    %v172 = vperm.slane %v124, %v171
    %vm173 = vcmask 195712
    %v174 = vsel %vm173, %v172, %v170
    %v175 = vadd.s32 %v165, 4294967272
    %v176 = vperm.slane %v127, %v175
    %vm177 = vcmask 261312
    %v178 = vsel %vm177, %v176, %v174
    %v179 = vperm.slane %v130, %v165
    %v180 = vperm.slane %v133, %v167
    %v181 = vsel %vm169, %v180, %v179
    %v182 = vperm.slane %v136, %v171
    %v183 = vsel %vm173, %v182, %v181
    %v184 = vperm.slane %v139, %v175
    %v185 = vsel %vm177, %v184, %v183
    %vm186 = vcmask 1041409
    %v187 = vsel %vm186, %v185, %v178
    %v189 = vmul.f32 %v148, %v187
    %v190 = vmul.f32 %v149, %v187
    %v191 = vmul.f32 %v150, %v187
    %v192 = vmul.f32 %v151, %v187
    %v193 = vmul.f32 %v152, %v187
    %v194 = vmul.f32 %v153, %v187
    %v195 = vmul.f32 %v154, %v187
    %v196 = vmul.f32 %v155, %v187
    %v197 = vsel %vm144, %v189, 0.0
    %198 = vadd.xlane.f32.xlu0 %v197
    %v199 = vpop.xlane.xlu0 %198
    %v200 = vsel %vm144, %v190, 0.0
    %201 = vadd.xlane.f32.xlu0 %v200
    %v202 = vpop.xlane.xlu0 %201
    %v203 = vsel %vm144, %v191, 0.0
    %204 = vadd.xlane.f32.xlu0 %v203
    %v205 = vpop.xlane.xlu0 %204
    %v206 = vsel %vm144, %v192, 0.0
    %207 = vadd.xlane.f32.xlu0 %v206
    %v208 = vpop.xlane.xlu0 %207
    %v209 = vsel %vm144, %v193, 0.0
    %210 = vadd.xlane.f32.xlu0 %v209
    %v211 = vpop.xlane.xlu0 %210
    %v212 = vsel %vm144, %v194, 0.0
    %213 = vadd.xlane.f32.xlu0 %v212
    %v214 = vpop.xlane.xlu0 %213
    %v215 = vsel %vm144, %v195, 0.0
    %216 = vadd.xlane.f32.xlu0 %v215
    %v217 = vpop.xlane.xlu0 %216
    %v218 = vsel %vm144, %v196, 0.0
    %219 = vadd.xlane.f32.xlu0 %v218
    %v220 = vpop.xlane.xlu0 %219
    %v229 = vperm.slane %v199, %v165
    %v230 = vperm.slane %v202, %v165
    %v231 = vperm.slane %v205, %v165
    %v232 = vperm.slane %v208, %v165
    %v233 = vperm.slane %v211, %v165
    %v234 = vperm.slane %v214, %v165
    %v235 = vperm.slane %v217, %v165
    %v236 = vperm.slane %v220, %v165
    %v237 = vsel %vm186, %v230, %v229
    %vm238 = vcmask 1042434
    %v239 = vsel %vm238, %v231, %v237
    %vm240 = vcmask 1043459
    %v241 = vsel %vm240, %v232, %v239
    %vm242 = vcmask 1044484
    %v243 = vsel %vm242, %v233, %v241
    %vm244 = vcmask 1045509
    %v245 = vsel %vm244, %v234, %v243
    %vm246 = vcmask 1046534
    %v247 = vsel %vm246, %v235, %v245
    %vm248 = vcmask 1047559
    %v249 = vsel %vm248, %v236, %v247
    %251 = vxpose.xlu0.b32.start [1/16] %v249, 128
    %252 = vxpose.xlu0.b32.cont [2/16] -1e+30, 128
    %253 = vxpose.xlu0.b32.cont [3/16] -1e+30, 128
    %254 = vxpose.xlu0.b32.cont [4/16] -1e+30, 128
    %255 = vxpose.xlu0.b32.cont [5/16] -1e+30, 128
    %256 = vxpose.xlu0.b32.cont [6/16] -1e+30, 128
    %257 = vxpose.xlu0.b32.cont [7/16] -1e+30, 128
    %258 = vxpose.xlu0.b32.cont [8/16] -1e+30, 128
    %259 = vxpose.xlu0.b32.cont [9/16] -1e+30, 128
    %260 = vxpose.xlu0.b32.cont [10/16] -1e+30, 128
    %261 = vxpose.xlu0.b32.cont [11/16] -1e+30, 128
    %262 = vxpose.xlu0.b32.cont [12/16] -1e+30, 128
    %263 = vxpose.xlu0.b32.cont [13/16] -1e+30, 128
    %264 = vxpose.xlu0.b32.cont [14/16] -1e+30, 128
    %265 = vxpose.xlu0.b32.cont [15/16] -1e+30, 128
    %266 = vxpose.xlu0.b32.end [16/16] -1e+30, 128
    %v267 = vpop.trf.xlu0
    %v268 = vpop.trf.xlu0
    %v269 = vpop.trf.xlu0
    %v270 = vpop.trf.xlu0
    %v271 = vpop.trf.xlu0
    %v272 = vpop.trf.xlu0
    %v273 = vpop.trf.xlu0
    %v274 = vpop.trf.xlu0
    %v275 = vpop.trf.xlu0
    %v276 = vpop.trf.xlu0
    %v277 = vpop.trf.xlu0
    %v278 = vpop.trf.xlu0
    %v279 = vpop.trf.xlu0
    %v280 = vpop.trf.xlu0
    %v281 = vpop.trf.xlu0
    %v282 = vpop.trf.xlu0
    %v283 = vadd.f32 %v267, %v147
    %vm284 = vcmask 1041408
    %v285 = vsel %vm284, %v283, -inf
    %286 = vmax.xlane.f32.xlu0 %v285
    %v287 = vpop.xlane.xlu0 %286
    %v288 = vsub.f32 %v283, %v287
    %v289 = vmul.f32 %v288, 1.442695
    %v290 = vpow.pop %v289
    %v291 = vsel %vm284, %v290, 0.0
    %292 = vadd.xlane.f32.xlu0 %v291
    %v293 = vpop.xlane.xlu0 %292
    %v294 = vrcp.pop %v293
    %v295 = vmul.f32 %v293, %v294
    %v296 = vsub.f32 2.0, %v295
    %v297 = vmul.f32 %v294, %v296
    %v298 = vmul.f32 %v293, %v297
    %v299 = vsub.f32 2.0, %v298
    %v300 = vmul.f32 %v297, %v299
    %v301 = vmul.f32 %v290, %v300
    %302 = vst [vmem:[#allocation8] sm:$0x3] %v301
    // Predicated region
    $region30: #{attn_forward.1} parent=1 // pred_check
      _
    $region31: #{attn_forward.1} parent=1 // pred_check_branch
      %304 = sbr.rel (0) target = $region33
    $region32: #{attn_forward.1} parent=1 // pred_region
      %306 = vsyncadd [#allocation4], 0
      %s308 = sshll.u32 [#allocation8], 4
      %s309 = int_to_ptr.vmem [resolvable:$true] %s308
      %s310 = sshll.u32 %s4, 4
      %s311 = int_to_ptr.hbm [resolvable:$true] %s310
      %313 = dma.vmem_to_hbm [thread:$0]  %s309, 32, %s311, [#allocation4]
    $region33: #{attn_forward.1} parent=1 // pred_fallthru
      _
    // Predicated region
    $region34: #{attn_forward.1} parent=1 // pred_check
      _
    $region35: #{attn_forward.1} parent=1 // pred_check_branch
      %315 = sbr.rel (0) target = $region37
    $region36: #{attn_forward.1} parent=1 // pred_region
      %317 = dma.done [#allocation4], 32
    $region37: #{attn_forward.1} parent=1 // pred_fallthru
      _
    %318 = vsyncpa [#allocation3], 1
    %319 = vsyncpa [#allocation6], 1
    %320 = vsyncpa [#allocation4], 1

</llo_original>
